<compile_context>
chip_gen: v6e
topology: v6e:2x2x1
jax: 0.10.0
libtpu: 0.0.40
codegen_flags: <defaults>
</compile_context>

<pallas_src>
import jax
import jax.numpy as jnp
from jax.experimental import pallas as pl
from jax.experimental.pallas import tpu as pltpu


def akgcn_kernel(lam1_ref, x_ref, theta_ref, adj_ref, o_ref):
    # lam1_ref : SMEM (1, 1) f32      -- lam1 = relu(lambda_param) = lambda - 1
    # x_ref    : VMEM (B*T*N, Cin)    -- natural row-major flattening of x
    # theta_ref: VMEM (Cin, Cout)
    # adj_ref  : VMEM (B, N, N)
    # o_ref    : VMEM (B*T*N, Cout)
    lam1 = lam1_ref[0, 0]

    batch, n, _ = adj_ref.shape
    btn = x_ref.shape[0]
    t_steps = btn // (batch * n)  # static python int

    # ONE feature-transform matmul over all (b, t, n) rows in a single MXU
    # launch; no kron-padded K dimension.
    h = jnp.dot(
        x_ref[...], theta_ref[...], preferred_element_type=jnp.float32
    )  # [B*T*N, Cout]

    # Per-batch propagation; the t-invariant normalisation is computed once
    # per b.  B and T are tiny here, so the loops are statically unrolled.
    for b in range(batch):
        adj_b = adj_ref[b]                                      # [N, N]
        denom = jnp.sum(adj_b, axis=-1, keepdims=True) + lam1   # [N, 1]
        # EUP approximate reciprocal + one Newton refinement step.
        # NOTE: like the PyTorch reference, this assumes rowsum(adj)+lam1 != 0
        # (same singularity as the original module; no epsilon added so the
        # semantics match exactly).
        inv = pl.reciprocal(denom, approx=True)
        inv = inv * (2.0 - denom * inv)
        for ts in range(t_steps):
            r0 = (b * t_steps + ts) * n                         # static, N-aligned
            h_bt = h[r0:r0 + n, :]                              # [N, Cout]
            agg = (
                jnp.dot(adj_b, h_bt, preferred_element_type=jnp.float32)
                + lam1 * h_bt
            )
            o_ref[r0:r0 + n, :] = jnp.maximum(agg * inv, 0.0).astype(o_ref.dtype)


def akgcn_layer(x, adj, theta, lambda_param):
    """Pallas implementation of AKGCN_Layer.forward.

    x:            [B, T, N, Cin] float32
    adj:          [B, N, N]      float32
    theta:        [Cin, Cout]    float32
    lambda_param: scalar         float32 (raw parameter; actual lambda = 1 + relu(.))
    returns:      [B, T, N, Cout] float32
    """
    b, t, n, cin = x.shape
    cout = theta.shape[1]

    # lam1 = relu(lambda_param), passed through SMEM as a (1, 1) scalar.
    lam1 = jnp.maximum(lambda_param, 0.0).reshape(1, 1).astype(jnp.float32)

    # Free contiguous collapse (no transpose, no data movement): rows are
    # ordered (b, t, n), matching the module's natural layout.
    x_r = x.reshape(b * t * n, cin)

    out_flat = pl.pallas_call(
        akgcn_kernel,
        out_shape=jax.ShapeDtypeStruct((b * t * n, cout), jnp.float32),
        grid_spec=pltpu.PrefetchScalarGridSpec(
            num_scalar_prefetch=0,
            grid=(1,),  # single invocation: all work fits one kernel body
            in_specs=[
                pl.BlockSpec(memory_space=pltpu.SMEM),                  # lam1
                pl.BlockSpec((b * t * n, cin), lambda i: (0, 0)),       # x
                pl.BlockSpec((cin, cout), lambda i: (0, 0)),            # theta
                pl.BlockSpec((b, n, n), lambda i: (0, 0, 0)),           # adj
            ],
            out_specs=pl.BlockSpec((b * t * n, cout), lambda i: (0, 0)),
        ),
        # Single step -> no megacore split; reintroduce a parallel B grid only
        # once per-step work amortises the ~600-cycle step overhead (large N).
        compiler_params=pltpu.CompilerParams(
            dimension_semantics=("arbitrary",),
        ),
    )(lam1, x_r, theta, adj)

    # Free reshape back to the module's output layout [B, T, N, Cout].
    return out_flat.reshape(b, t, n, cout)


def akgcn_reference(x, adj, theta, lambda_param):
    """Pure-JAX reference matching the PyTorch forward exactly."""
    b, t, n, cin = x.shape
    lam = 1.0 + jnp.maximum(lambda_param, 0.0)
    h = jnp.einsum("btnc,cd->btnd", x, theta)
    eye = jnp.eye(n, dtype=x.dtype)[None]                       # [1, N, N]
    v = ((2.0 * lam - 2.0) / lam) * eye + (2.0 / lam) * adj     # [B, N, N]
    v = v / jnp.sum(v, axis=-1, keepdims=True)
    out = jnp.einsum("bij,btjd->btid", v, h)
    return jnp.maximum(out, 0.0)


if __name__ == "__main__":
    # Small shapes consistent with the module: batch=2, timesteps=3,
    # nodes=8, in_dim=4, out_dim=32.
    B, T, N, IN_DIM, OUT_DIM = 2, 3, 8, 4, 32

    key = jax.random.PRNGKey(0)
    kx, kadj, ktheta = jax.random.split(key, 3)

    x = jax.random.normal(kx, (B, T, N, IN_DIM), dtype=jnp.float32)
    # Non-negative random adjacency weights, like a typical graph adjacency.
    adj = jax.random.uniform(kadj, (B, N, N), dtype=jnp.float32)

    # Mirrors torch.rand(in_dim, out_dim) and lambda_ = 1.0.
    theta = jax.random.uniform(ktheta, (IN_DIM, OUT_DIM), dtype=jnp.float32)
    lambda_param = jnp.float32(1.0)

    out = akgcn_layer(x, adj, theta, lambda_param)
    out = jax.block_until_ready(out)

    ref = akgcn_reference(x, adj, theta, lambda_param)
    assert out.shape == (B, T, N, OUT_DIM)
    # Same math, different f32 summation order + Newton-refined reciprocal.
    assert jnp.allclose(out, ref, atol=1e-4, rtol=1e-4)

    print("KERNEL_OK")
</pallas_src>

<mosaic_0001>
module attributes {stable_mosaic.version = 11 : i64} {
  func.func @akgcn_kernel(%arg0: i32, %arg1: memref<1x1xf32, #tpu.memory_space<smem>>, %arg2: memref<48x4xf32, #tpu.memory_space<vmem>>, %arg3: memref<4x32xf32, #tpu.memory_space<vmem>>, %arg4: memref<2x8x8xf32, #tpu.memory_space<vmem>>, %arg5: memref<48x32xf32, #tpu.memory_space<vmem>>) attributes {dimension_semantics = [#tpu.dimension_semantics<arbitrary>], iteration_bounds = array<i64: 1>, scalar_prefetch = 0 : i64, scratch_operands = 0 : i64, tpu.core_type = #tpu.core_type<tc>, window_params = [{transform_indices = @transform_0, window_bounds = array<i64: 1, 1>}, {pipeline_mode = #tpu.pipeline_mode<synchronous>, transform_indices = @transform_1, window_bounds = array<i64: 48, 4>}, {pipeline_mode = #tpu.pipeline_mode<synchronous>, transform_indices = @transform_2, window_bounds = array<i64: 4, 32>}, {pipeline_mode = #tpu.pipeline_mode<synchronous>, transform_indices = @transform_3, window_bounds = array<i64: 2, 8, 8>}, {pipeline_mode = #tpu.pipeline_mode<synchronous>, transform_indices = @transform_4, window_bounds = array<i64: 48, 32>}]} {
    %c0 = arith.constant 0 : index
    %c0_0 = arith.constant 0 : index
    %0 = memref.load %arg1[%c0, %c0_0] : memref<1x1xf32, #tpu.memory_space<smem>>
    %c0_1 = arith.constant 0 : index
    %c0_2 = arith.constant 0 : index
    %1 = vector.load %arg2[%c0_1, %c0_2] : memref<48x4xf32, #tpu.memory_space<vmem>>, vector<48x4xf32>
    %c0_3 = arith.constant 0 : index
    %c0_4 = arith.constant 0 : index
    %2 = vector.load %arg3[%c0_3, %c0_4] : memref<4x32xf32, #tpu.memory_space<vmem>>, vector<4x32xf32>
    %cst = arith.constant dense<0.000000e+00> : vector<48x32xf32>
    %3 = tpu.matmul %1, %2, %cst {dimension_numbers = #tpu.dot_dimension_numbers<[1], [0], [0], [1], [0, 0, 1, 1], [], []>} : vector<48x4xf32>, vector<4x32xf32>, vector<48x32xf32> -> vector<48x32xf32>
    %c0_5 = arith.constant 0 : index
    %c0_6 = arith.constant 0 : index
    %c0_7 = arith.constant 0 : index
    %4 = vector.load %arg4[%c0_5, %c0_6, %c0_7] : memref<2x8x8xf32, #tpu.memory_space<vmem>>, vector<1x8x8xf32>
    %5 = vector.shape_cast %4 : vector<1x8x8xf32> to vector<8x8xf32>
    %cst_8 = arith.constant dense<0.000000e+00> : vector<8xf32>
    %6 = vector.multi_reduction <add>, %5, %cst_8 [1] : vector<8x8xf32> to vector<8xf32>
    %7 = vector.shape_cast %6 : vector<8xf32> to vector<8x1xf32>
    %8 = vector.broadcast %0 : f32 to vector<8x1xf32>
    %9 = arith.addf %7, %8 : vector<8x1xf32>
    %10 = tpu.reciprocal %9 {approx = true} : vector<8x1xf32> -> vector<8x1xf32>
    %11 = arith.mulf %9, %10 : vector<8x1xf32>
    %cst_9 = arith.constant 2.000000e+00 : f32
    %12 = vector.broadcast %cst_9 : f32 to vector<8x1xf32>
    %13 = arith.subf %12, %11 : vector<8x1xf32>
    %14 = arith.mulf %10, %13 : vector<8x1xf32>
    %15 = vector.extract_strided_slice %3 {offsets = [0, 0], sizes = [8, 32], strides = [1, 1]} : vector<48x32xf32> to vector<8x32xf32>
    %cst_10 = arith.constant dense<0.000000e+00> : vector<8x32xf32>
    %16 = tpu.matmul %5, %15, %cst_10 {dimension_numbers = #tpu.dot_dimension_numbers<[1], [0], [0], [1], [0, 0, 1, 1], [], []>} : vector<8x8xf32>, vector<8x32xf32>, vector<8x32xf32> -> vector<8x32xf32>
    %17 = vector.broadcast %0 : f32 to vector<8x32xf32>
    %18 = arith.mulf %17, %15 : vector<8x32xf32>
    %19 = arith.addf %16, %18 : vector<8x32xf32>
    %20 = vector.broadcast %14 : vector<8x1xf32> to vector<8x32xf32>
    %21 = arith.mulf %19, %20 : vector<8x32xf32>
    %cst_11 = arith.constant 0.000000e+00 : f32
    %22 = vector.broadcast %cst_11 : f32 to vector<8x32xf32>
    %23 = arith.maximumf %21, %22 : vector<8x32xf32>
    %c0_12 = arith.constant 0 : index
    %c0_13 = arith.constant 0 : index
    %24 = vector.load %arg5[%c0_12, %c0_13] : memref<48x32xf32, #tpu.memory_space<vmem>>, vector<8x32xf32>
    tpu.vector_store %arg5[%c0_12, %c0_13], %23 {strides = array<i32>} : memref<48x32xf32, #tpu.memory_space<vmem>>, vector<8x32xf32>,
    %25 = vector.extract_strided_slice %3 {offsets = [8, 0], sizes = [8, 32], strides = [1, 1]} : vector<48x32xf32> to vector<8x32xf32>
    %cst_14 = arith.constant dense<0.000000e+00> : vector<8x32xf32>
    %26 = tpu.matmul %5, %25, %cst_14 {dimension_numbers = #tpu.dot_dimension_numbers<[1], [0], [0], [1], [0, 0, 1, 1], [], []>} : vector<8x8xf32>, vector<8x32xf32>, vector<8x32xf32> -> vector<8x32xf32>
    %27 = vector.broadcast %0 : f32 to vector<8x32xf32>
    %28 = arith.mulf %27, %25 : vector<8x32xf32>
    %29 = arith.addf %26, %28 : vector<8x32xf32>
    %30 = vector.broadcast %14 : vector<8x1xf32> to vector<8x32xf32>
    %31 = arith.mulf %29, %30 : vector<8x32xf32>
    %cst_15 = arith.constant 0.000000e+00 : f32
    %32 = vector.broadcast %cst_15 : f32 to vector<8x32xf32>
    %33 = arith.maximumf %31, %32 : vector<8x32xf32>
    %c8 = arith.constant 8 : index
    %c0_16 = arith.constant 0 : index
    %34 = vector.load %arg5[%c8, %c0_16] : memref<48x32xf32, #tpu.memory_space<vmem>>, vector<8x32xf32>
    tpu.vector_store %arg5[%c8, %c0_16], %33 {strides = array<i32>} : memref<48x32xf32, #tpu.memory_space<vmem>>, vector<8x32xf32>,
    %35 = vector.extract_strided_slice %3 {offsets = [16, 0], sizes = [8, 32], strides = [1, 1]} : vector<48x32xf32> to vector<8x32xf32>
    %cst_17 = arith.constant dense<0.000000e+00> : vector<8x32xf32>
    %36 = tpu.matmul %5, %35, %cst_17 {dimension_numbers = #tpu.dot_dimension_numbers<[1], [0], [0], [1], [0, 0, 1, 1], [], []>} : vector<8x8xf32>, vector<8x32xf32>, vector<8x32xf32> -> vector<8x32xf32>
    %37 = vector.broadcast %0 : f32 to vector<8x32xf32>
    %38 = arith.mulf %37, %35 : vector<8x32xf32>
    %39 = arith.addf %36, %38 : vector<8x32xf32>
    %40 = vector.broadcast %14 : vector<8x1xf32> to vector<8x32xf32>
    %41 = arith.mulf %39, %40 : vector<8x32xf32>
    %cst_18 = arith.constant 0.000000e+00 : f32
    %42 = vector.broadcast %cst_18 : f32 to vector<8x32xf32>
    %43 = arith.maximumf %41, %42 : vector<8x32xf32>
    %c16 = arith.constant 16 : index
    %c0_19 = arith.constant 0 : index
    %44 = vector.load %arg5[%c16, %c0_19] : memref<48x32xf32, #tpu.memory_space<vmem>>, vector<8x32xf32>
    tpu.vector_store %arg5[%c16, %c0_19], %43 {strides = array<i32>} : memref<48x32xf32, #tpu.memory_space<vmem>>, vector<8x32xf32>,
    %c1 = arith.constant 1 : index
    %c0_20 = arith.constant 0 : index
    %c0_21 = arith.constant 0 : index
    %45 = vector.load %arg4[%c1, %c0_20, %c0_21] : memref<2x8x8xf32, #tpu.memory_space<vmem>>, vector<1x8x8xf32>
    %46 = vector.shape_cast %45 : vector<1x8x8xf32> to vector<8x8xf32>
    %cst_22 = arith.constant dense<0.000000e+00> : vector<8xf32>
    %47 = vector.multi_reduction <add>, %46, %cst_22 [1] : vector<8x8xf32> to vector<8xf32>
    %48 = vector.shape_cast %47 : vector<8xf32> to vector<8x1xf32>
    %49 = vector.broadcast %0 : f32 to vector<8x1xf32>
    %50 = arith.addf %48, %49 : vector<8x1xf32>
    %51 = tpu.reciprocal %50 {approx = true} : vector<8x1xf32> -> vector<8x1xf32>
    %52 = arith.mulf %50, %51 : vector<8x1xf32>
    %cst_23 = arith.constant 2.000000e+00 : f32
    %53 = vector.broadcast %cst_23 : f32 to vector<8x1xf32>
    %54 = arith.subf %53, %52 : vector<8x1xf32>
    %55 = arith.mulf %51, %54 : vector<8x1xf32>
    %56 = vector.extract_strided_slice %3 {offsets = [24, 0], sizes = [8, 32], strides = [1, 1]} : vector<48x32xf32> to vector<8x32xf32>
    %cst_24 = arith.constant dense<0.000000e+00> : vector<8x32xf32>
    %57 = tpu.matmul %46, %56, %cst_24 {dimension_numbers = #tpu.dot_dimension_numbers<[1], [0], [0], [1], [0, 0, 1, 1], [], []>} : vector<8x8xf32>, vector<8x32xf32>, vector<8x32xf32> -> vector<8x32xf32>
    %58 = vector.broadcast %0 : f32 to vector<8x32xf32>
    %59 = arith.mulf %58, %56 : vector<8x32xf32>
    %60 = arith.addf %57, %59 : vector<8x32xf32>
    %61 = vector.broadcast %55 : vector<8x1xf32> to vector<8x32xf32>
    %62 = arith.mulf %60, %61 : vector<8x32xf32>
    %cst_25 = arith.constant 0.000000e+00 : f32
    %63 = vector.broadcast %cst_25 : f32 to vector<8x32xf32>
    %64 = arith.maximumf %62, %63 : vector<8x32xf32>
    %c24 = arith.constant 24 : index
    %c0_26 = arith.constant 0 : index
    %65 = vector.load %arg5[%c24, %c0_26] : memref<48x32xf32, #tpu.memory_space<vmem>>, vector<8x32xf32>
    tpu.vector_store %arg5[%c24, %c0_26], %64 {strides = array<i32>} : memref<48x32xf32, #tpu.memory_space<vmem>>, vector<8x32xf32>,
    %66 = vector.extract_strided_slice %3 {offsets = [32, 0], sizes = [8, 32], strides = [1, 1]} : vector<48x32xf32> to vector<8x32xf32>
    %cst_27 = arith.constant dense<0.000000e+00> : vector<8x32xf32>
    %67 = tpu.matmul %46, %66, %cst_27 {dimension_numbers = #tpu.dot_dimension_numbers<[1], [0], [0], [1], [0, 0, 1, 1], [], []>} : vector<8x8xf32>, vector<8x32xf32>, vector<8x32xf32> -> vector<8x32xf32>
    %68 = vector.broadcast %0 : f32 to vector<8x32xf32>
    %69 = arith.mulf %68, %66 : vector<8x32xf32>
    %70 = arith.addf %67, %69 : vector<8x32xf32>
    %71 = vector.broadcast %55 : vector<8x1xf32> to vector<8x32xf32>
    %72 = arith.mulf %70, %71 : vector<8x32xf32>
    %cst_28 = arith.constant 0.000000e+00 : f32
    %73 = vector.broadcast %cst_28 : f32 to vector<8x32xf32>
    %74 = arith.maximumf %72, %73 : vector<8x32xf32>
    %c32 = arith.constant 32 : index
    %c0_29 = arith.constant 0 : index
    %75 = vector.load %arg5[%c32, %c0_29] : memref<48x32xf32, #tpu.memory_space<vmem>>, vector<8x32xf32>
    tpu.vector_store %arg5[%c32, %c0_29], %74 {strides = array<i32>} : memref<48x32xf32, #tpu.memory_space<vmem>>, vector<8x32xf32>,
    %76 = vector.extract_strided_slice %3 {offsets = [40, 0], sizes = [8, 32], strides = [1, 1]} : vector<48x32xf32> to vector<8x32xf32>
    %cst_30 = arith.constant dense<0.000000e+00> : vector<8x32xf32>
    %77 = tpu.matmul %46, %76, %cst_30 {dimension_numbers = #tpu.dot_dimension_numbers<[1], [0], [0], [1], [0, 0, 1, 1], [], []>} : vector<8x8xf32>, vector<8x32xf32>, vector<8x32xf32> -> vector<8x32xf32>
    %78 = vector.broadcast %0 : f32 to vector<8x32xf32>
    %79 = arith.mulf %78, %76 : vector<8x32xf32>
    %80 = arith.addf %77, %79 : vector<8x32xf32>
    %81 = vector.broadcast %55 : vector<8x1xf32> to vector<8x32xf32>
    %82 = arith.mulf %80, %81 : vector<8x32xf32>
    %cst_31 = arith.constant 0.000000e+00 : f32
    %83 = vector.broadcast %cst_31 : f32 to vector<8x32xf32>
    %84 = arith.maximumf %82, %83 : vector<8x32xf32>
    %c40 = arith.constant 40 : index
    %c0_32 = arith.constant 0 : index
    %85 = vector.load %arg5[%c40, %c0_32] : memref<48x32xf32, #tpu.memory_space<vmem>>, vector<8x32xf32>
    tpu.vector_store %arg5[%c40, %c0_32], %84 {strides = array<i32>} : memref<48x32xf32, #tpu.memory_space<vmem>>, vector<8x32xf32>,
    return
  }
  func.func @transform_0(%arg0: i32) -> (i32, i32) {
    %c0_i32 = arith.constant 0 : i32
    %c0_i32_0 = arith.constant 0 : i32
    %c0_i32_1 = arith.constant 0 : i32
    return %c0_i32, %c0_i32_0 : i32, i32
  }
  func.func @transform_1(%arg0: i32) -> (i32, i32) {
    %c0_i32 = arith.constant 0 : i32
    %c0_i32_0 = arith.constant 0 : i32
    %c0_i32_1 = arith.constant 0 : i32
    return %c0_i32, %c0_i32_0 : i32, i32
  }
  func.func @transform_2(%arg0: i32) -> (i32, i32) {
    %c0_i32 = arith.constant 0 : i32
    %c0_i32_0 = arith.constant 0 : i32
    %c0_i32_1 = arith.constant 0 : i32
    return %c0_i32, %c0_i32_0 : i32, i32
  }
  func.func @transform_3(%arg0: i32) -> (i32, i32, i32) {
    %c0_i32 = arith.constant 0 : i32
    %c0_i32_0 = arith.constant 0 : i32
    %c0_i32_1 = arith.constant 0 : i32
    %c0_i32_2 = arith.constant 0 : i32
    return %c0_i32, %c0_i32_0, %c0_i32_1 : i32, i32, i32
  }
  func.func @transform_4(%arg0: i32) -> (i32, i32) {
    %c0_i32 = arith.constant 0 : i32
    %c0_i32_0 = arith.constant 0 : i32
    %c0_i32_1 = arith.constant 0 : i32
    return %c0_i32, %c0_i32_0 : i32, i32
  }
}

</mosaic_0001>

<llo_original>
// kernel: tpu_custom_call.1
$region0: #{tpu_custom_call.1}
  #allocation0 [shape = 'u32[]', space=smem, size = 0x4, offset = 0x4, fixed_abs, tag = 'smem constant byte address 0x4 - core index']
  #allocation1 [shape = 'u32[144,128]{1,0:T(1,128)}', space=vmem, size = 0x12000, scoped, tag = 'internal scratch']
  #allocation2 [shape = 'f32[1,1]{1,0:T(1,128)S(6)}', space=smem, size = 0x200, scoped, tag = 'scoped memory for tpu_custom_call.1']
  %s0 = inlined_call_operand.<no memory space> [shape: f32[1,1], index: 0, kind: input, shape index: {}]
  %s1 = inlined_call_operand.vmem [shape: f32[48,4], index: 1, kind: input, shape index: {}]
  %s2 = inlined_call_operand.vmem [shape: f32[4,32], index: 2, kind: input, shape index: {}]
  %s3 = inlined_call_operand.vmem [shape: f32[2,8,8], index: 3, kind: input, shape index: {}]
  %s4 = inlined_call_operand.vmem [shape: f32[48,32], index: 4, kind: output, shape index: {}]
  %s5 = sld [smem:[#allocation0]]
  $region26: #{tpu_custom_call.1} parent=0
    _
  %s7 = ssub.s32 1, %s5
  %s8 = scalar_select 0, %s7, %s5
  %9 = sst [smem:[#allocation2]] %s0
  // Predicated region
  $region2: #{tpu_custom_call.1} parent=0 // pred_check
    _
  $region3: #{tpu_custom_call.1} parent=0 // pred_check_branch
    %11 = sbr.rel (0) target = $region5
  $region4: #{tpu_custom_call.1} parent=0 // pred_region
    _
  $region5: #{tpu_custom_call.1} parent=0 // pred_fallthru
    _
  // Predicated region
  $region6: #{tpu_custom_call.1} parent=0 // pred_check
    _
  $region7: #{tpu_custom_call.1} parent=0 // pred_check_branch
    %13 = sbr.rel (0) target = $region9
  $region8: #{tpu_custom_call.1} parent=0 // pred_region
    _
  $region9: #{tpu_custom_call.1} parent=0 // pred_fallthru
    _
  // Predicated region
  $region10: #{tpu_custom_call.1} parent=0 // pred_check
    _
  $region11: #{tpu_custom_call.1} parent=0 // pred_check_branch
    %15 = sbr.rel (0) target = $region13
  $region12: #{tpu_custom_call.1} parent=0 // pred_region
    _
  $region13: #{tpu_custom_call.1} parent=0 // pred_fallthru
    _
  // Predicated region
  $region14: #{tpu_custom_call.1} parent=0 // pred_check
    _
  $region15: #{tpu_custom_call.1} parent=0 // pred_check_branch
    %17 = sbr.rel (0) target = $region17
  $region16: #{tpu_custom_call.1} parent=0 // pred_region
    _
  $region17: #{tpu_custom_call.1} parent=0 // pred_fallthru
    _
  %s18 = sld [smem:[#allocation2]]
  %v19 = vld [vmem:[%s1] sm:$0xff]
  %v20 = vld [vmem:[%s1 + $0x8] sm:$0xff]
  %v21 = vld [vmem:[%s1 + $0x10] sm:$0xff]
  %v22 = vld [vmem:[%s1 + $0x18] sm:$0xff]
  %v23 = vld [vmem:[%s1 + $0x20] sm:$0xff]
  %v24 = vld [vmem:[%s1 + $0x28] sm:$0xff]
  %v25 = vld [vmem:[%s2] sm:$0xf]
  %vm26 = vcmask 31744
  %v28 = vsel %vm26, %v19, 0
  %v31 = vsel %vm26, %v20, 0
  %v34 = vsel %vm26, %v21, 0
  %v37 = vsel %vm26, %v22, 0
  %v40 = vsel %vm26, %v23, 0
  %v43 = vsel %vm26, %v24, 0
  %vm45 = vcmask 1043456
  %v47 = vsel %vm45, %v25, 0
  %49 = vmatprep.subr.mxu0 0.0
  %50 = vmatpush1.msra.mxu0 0.0
  %51 = vmatprep.subr.mxu0 0.0
  %52 = vmatpush1.msra.mxu0 0.0
  %53 = vmatprep.subr.mxu0 0.0
  %54 = vmatpush1.msra.mxu0 0.0
  %55 = vmatprep.subr.mxu0 0.0
  %56 = vmatpush1.msra.mxu0 0.0
  %57 = vmatprep.subr.mxu0 0.0
  %58 = vmatpush1.msra.mxu0 0.0
  %59 = vmatprep.subr.mxu0 0.0
  %60 = vmatpush1.msra.mxu0 0.0
  %61 = vmatprep.subr.mxu0 0.0
  %62 = vmatpush1.msra.mxu0 0.0
  %63 = vmatprep.subr.mxu0 0.0
  %64 = vmatpush1.msra.mxu0 0.0
  %65 = vmatprep.subr.mxu0 0.0
  %66 = vmatpush1.msra.mxu0 0.0
  %67 = vmatprep.subr.mxu0 0.0
  %68 = vmatpush1.msra.mxu0 0.0
  %69 = vmatprep.subr.mxu0 0.0
  %70 = vmatpush1.msra.mxu0 0.0
  %71 = vmatprep.subr.mxu0 0.0
  %72 = vmatpush1.msra.mxu0 0.0
  %73 = vmatprep.subr.mxu0 0.0
  %74 = vmatpush1.msra.mxu0 0.0
  %75 = vmatprep.subr.mxu0 0.0
  %76 = vmatpush1.msra.mxu0 0.0
  %77 = vmatprep.subr.mxu0 0.0
  %78 = vmatpush1.msra.mxu0 0.0
  %79 = vmatprep.subr.mxu0 0.0
  %80 = vmatpush1.msra.mxu0 %v47
  %81 = vmatprep.subr.mxu0 0.0
  %82 = vmatpush2.msra.mxu0 0.0
  %83 = vmatprep.subr.mxu0 0.0
  %84 = vmatpush2.msra.mxu0 0.0
  %85 = vmatprep.subr.mxu0 0.0
  %86 = vmatpush2.msra.mxu0 0.0
  %87 = vmatprep.subr.mxu0 0.0
  %88 = vmatpush2.msra.mxu0 0.0
  %89 = vmatprep.subr.mxu0 0.0
  %90 = vmatpush2.msra.mxu0 0.0
  %91 = vmatprep.subr.mxu0 0.0
  %92 = vmatpush2.msra.mxu0 0.0
  %93 = vmatprep.subr.mxu0 0.0
  %94 = vmatpush2.msra.mxu0 0.0
  %95 = vmatprep.subr.mxu0 0.0
  %96 = vmatpush2.msra.mxu0 0.0
  %97 = vmatprep.subr.mxu0 0.0
  %98 = vmatpush2.msra.mxu0 0.0
  %99 = vmatprep.subr.mxu0 0.0
  %100 = vmatpush2.msra.mxu0 0.0
  %101 = vmatprep.subr.mxu0 0.0
  %102 = vmatpush2.msra.mxu0 0.0
  %103 = vmatprep.subr.mxu0 0.0
  %104 = vmatpush2.msra.mxu0 0.0
  %105 = vmatprep.subr.mxu0 0.0
  %106 = vmatpush2.msra.mxu0 0.0
  %107 = vmatprep.subr.mxu0 0.0
  %108 = vmatpush2.msra.mxu0 0.0
  %109 = vmatprep.subr.mxu0 0.0
  %110 = vmatpush2.msra.mxu0 0.0
  %111 = vmatprep.subr.mxu0 0.0
  %112 = vmatpush2.msra.mxu0 0.0
  %113 = vmatprep.mubr.f32.mxu0 0.0
  %114 = vmatmul.mubr.f32.gmra.mxu0 %v28
  %v115 = vpop.f32.mrf.mxu0
  %v116 = vadd.f32 0.0, %v115
  %v117 = vpop.f32.mrf.mxu0
  %118 = vmatprep.mubr.f32.mxu0 0.0
  %119 = vmatmul.mubr.f32.gmra.mxu0 %v31
  %v120 = vpop.f32.mrf.mxu0
  %v121 = vadd.f32 0.0, %v120
  %v122 = vpop.f32.mrf.mxu0
  %123 = vmatprep.mubr.f32.mxu0 0.0
  %124 = vmatmul.mubr.f32.gmra.mxu0 %v34
  %v125 = vpop.f32.mrf.mxu0
  %v126 = vadd.f32 0.0, %v125
  %v127 = vpop.f32.mrf.mxu0
  %128 = vmatprep.mubr.f32.mxu0 0.0
  %129 = vmatmul.mubr.f32.gmra.mxu0 %v37
  %v130 = vpop.f32.mrf.mxu0
  %v131 = vadd.f32 0.0, %v130
  %v132 = vpop.f32.mrf.mxu0
  %133 = vmatprep.mubr.f32.mxu0 0.0
  %134 = vmatmul.mubr.f32.gmra.mxu0 %v40
  %v135 = vpop.f32.mrf.mxu0
  %v136 = vadd.f32 0.0, %v135
  %v137 = vpop.f32.mrf.mxu0
  %138 = vmatprep.mubr.f32.mxu0 0.0
  %139 = vmatmul.mubr.f32.gmra.mxu0 %v43
  %v140 = vpop.f32.mrf.mxu0
  %v141 = vadd.f32 0.0, %v140
  %v142 = vpop.f32.mrf.mxu0
  %143 = vdwg.mxu0
  %v144 = vld [vmem:[%s3] sm:$0xff]
  %vm145 = vcmask 64512
  %v146 = vsel %vm145, %v144, 0.0
  %147 = vadd.xlane.f32.xlu0 %v146
  %v148 = vpop.xlane.xlu0 %147
  %v149 = vstv %s18
  %v150 = vadd.f32 %v148, %v149
  %v151 = vrcp.pop %v150
  %v152 = vmul.f32 %v150, %v151
  %v153 = vsub.f32 2.0, %v152
  %v154 = vmul.f32 %v151, %v153
  %v155 = vmul.f32 %v149, %v116
  %v157 = vsel %vm145, %v144, 0
  %159 = vmatprep.subr.mxu0 0.0
  %160 = vmatpush1.msra.mxu0 0.0
  %161 = vmatprep.subr.mxu0 0.0
  %162 = vmatpush1.msra.mxu0 0.0
  %163 = vmatprep.subr.mxu0 0.0
  %164 = vmatpush1.msra.mxu0 0.0
  %165 = vmatprep.subr.mxu0 0.0
  %166 = vmatpush1.msra.mxu0 0.0
  %167 = vmatprep.subr.mxu0 0.0
  %168 = vmatpush1.msra.mxu0 0.0
  %169 = vmatprep.subr.mxu0 0.0
  %170 = vmatpush1.msra.mxu0 0.0
  %171 = vmatprep.subr.mxu0 0.0
  %172 = vmatpush1.msra.mxu0 0.0
  %173 = vmatprep.subr.mxu0 0.0
  %174 = vmatpush1.msra.mxu0 0.0
  %175 = vmatprep.subr.mxu0 0.0
  %176 = vmatpush1.msra.mxu0 0.0
  %177 = vmatprep.subr.mxu0 0.0
  %178 = vmatpush1.msra.mxu0 0.0
  %179 = vmatprep.subr.mxu0 0.0
  %180 = vmatpush1.msra.mxu0 0.0
  %181 = vmatprep.subr.mxu0 0.0
  %182 = vmatpush1.msra.mxu0 0.0
  %183 = vmatprep.subr.mxu0 0.0
  %184 = vmatpush1.msra.mxu0 0.0
  %185 = vmatprep.subr.mxu0 0.0
  %186 = vmatpush1.msra.mxu0 0.0
  %187 = vmatprep.subr.mxu0 0.0
  %188 = vmatpush1.msra.mxu0 0.0
  %189 = vmatprep.subr.mxu0 0.0
  %190 = vmatpush1.msra.mxu0 %v116
  %191 = vmatprep.subr.mxu0 0.0
  %192 = vmatpush2.msra.mxu0 0.0
  %193 = vmatprep.subr.mxu0 0.0
  %194 = vmatpush2.msra.mxu0 0.0
  %195 = vmatprep.subr.mxu0 0.0
  %196 = vmatpush2.msra.mxu0 0.0
  %197 = vmatprep.subr.mxu0 0.0
  %198 = vmatpush2.msra.mxu0 0.0
  %199 = vmatprep.subr.mxu0 0.0
  %200 = vmatpush2.msra.mxu0 0.0
  %201 = vmatprep.subr.mxu0 0.0
  %202 = vmatpush2.msra.mxu0 0.0
  %203 = vmatprep.subr.mxu0 0.0
  %204 = vmatpush2.msra.mxu0 0.0
  %205 = vmatprep.subr.mxu0 0.0
  %206 = vmatpush2.msra.mxu0 0.0
  %207 = vmatprep.subr.mxu0 0.0
  %208 = vmatpush2.msra.mxu0 0.0
  %209 = vmatprep.subr.mxu0 0.0
  %210 = vmatpush2.msra.mxu0 0.0
  %211 = vmatprep.subr.mxu0 0.0
  %212 = vmatpush2.msra.mxu0 0.0
  %213 = vmatprep.subr.mxu0 0.0
  %214 = vmatpush2.msra.mxu0 0.0
  %215 = vmatprep.subr.mxu0 0.0
  %216 = vmatpush2.msra.mxu0 0.0
  %217 = vmatprep.subr.mxu0 0.0
  %218 = vmatpush2.msra.mxu0 0.0
  %219 = vmatprep.subr.mxu0 0.0
  %220 = vmatpush2.msra.mxu0 0.0
  %221 = vmatprep.subr.mxu0 0.0
  %222 = vmatpush2.msra.mxu0 0.0
  %223 = vmatprep.mubr.f32.mxu0 0.0
  %224 = vmatmul.mubr.f32.gmra.mxu0 %v157
  %v225 = vpop.f32.mrf.mxu0
  %v226 = vadd.f32 %v155, %v225
  %v227 = vpop.f32.mrf.mxu0
  %228 = vdwg.mxu0
  %v229 = vmul.f32 %v226, %v154
  %v230 = vmax.f32 %v229, 0.0
  %vm231 = vcmask 261120
  %232 = vst.msk [vmem:[%s4] sm:$0xff] %vm231, %v230
  %v233 = vmul.f32 %v149, %v121
  %234 = vmatprep.subr.mxu0 0.0
  %235 = vmatpush1.msra.mxu0 0.0
  %236 = vmatprep.subr.mxu0 0.0
  %237 = vmatpush1.msra.mxu0 0.0
  %238 = vmatprep.subr.mxu0 0.0
  %239 = vmatpush1.msra.mxu0 0.0
  %240 = vmatprep.subr.mxu0 0.0
  %241 = vmatpush1.msra.mxu0 0.0
  %242 = vmatprep.subr.mxu0 0.0
  %243 = vmatpush1.msra.mxu0 0.0
  %244 = vmatprep.subr.mxu0 0.0
  %245 = vmatpush1.msra.mxu0 0.0
  %246 = vmatprep.subr.mxu0 0.0
  %247 = vmatpush1.msra.mxu0 0.0
  %248 = vmatprep.subr.mxu0 0.0
  %249 = vmatpush1.msra.mxu0 0.0
  %250 = vmatprep.subr.mxu0 0.0
  %251 = vmatpush1.msra.mxu0 0.0
  %252 = vmatprep.subr.mxu0 0.0
  %253 = vmatpush1.msra.mxu0 0.0
  %254 = vmatprep.subr.mxu0 0.0
  %255 = vmatpush1.msra.mxu0 0.0
  %256 = vmatprep.subr.mxu0 0.0
  %257 = vmatpush1.msra.mxu0 0.0
  %258 = vmatprep.subr.mxu0 0.0
  %259 = vmatpush1.msra.mxu0 0.0
  %260 = vmatprep.subr.mxu0 0.0
  %261 = vmatpush1.msra.mxu0 0.0
  %262 = vmatprep.subr.mxu0 0.0
  %263 = vmatpush1.msra.mxu0 0.0
  %264 = vmatprep.subr.mxu0 0.0
  %265 = vmatpush1.msra.mxu0 %v121
  %266 = vmatprep.subr.mxu0 0.0
  %267 = vmatpush2.msra.mxu0 0.0
  %268 = vmatprep.subr.mxu0 0.0
  %269 = vmatpush2.msra.mxu0 0.0
  %270 = vmatprep.subr.mxu0 0.0
  %271 = vmatpush2.msra.mxu0 0.0
  %272 = vmatprep.subr.mxu0 0.0
  %273 = vmatpush2.msra.mxu0 0.0
  %274 = vmatprep.subr.mxu0 0.0
  %275 = vmatpush2.msra.mxu0 0.0
  %276 = vmatprep.subr.mxu0 0.0
  %277 = vmatpush2.msra.mxu0 0.0
  %278 = vmatprep.subr.mxu0 0.0
  %279 = vmatpush2.msra.mxu0 0.0
  %280 = vmatprep.subr.mxu0 0.0
  %281 = vmatpush2.msra.mxu0 0.0
  %282 = vmatprep.subr.mxu0 0.0
  %283 = vmatpush2.msra.mxu0 0.0
  %284 = vmatprep.subr.mxu0 0.0
  %285 = vmatpush2.msra.mxu0 0.0
  %286 = vmatprep.subr.mxu0 0.0
  %287 = vmatpush2.msra.mxu0 0.0
  %288 = vmatprep.subr.mxu0 0.0
  %289 = vmatpush2.msra.mxu0 0.0
  %290 = vmatprep.subr.mxu0 0.0
  %291 = vmatpush2.msra.mxu0 0.0
  %292 = vmatprep.subr.mxu0 0.0
  %293 = vmatpush2.msra.mxu0 0.0
  %294 = vmatprep.subr.mxu0 0.0
  %295 = vmatpush2.msra.mxu0 0.0
  %296 = vmatprep.subr.mxu0 0.0
  %297 = vmatpush2.msra.mxu0 0.0
  %298 = vmatprep.mubr.f32.mxu0 0.0
  %299 = vmatmul.mubr.f32.gmra.mxu0 %v157
  %v300 = vpop.f32.mrf.mxu0
  %v301 = vadd.f32 %v233, %v300
  %v302 = vpop.f32.mrf.mxu0
  %303 = vdwg.mxu0
  %v304 = vmul.f32 %v301, %v154
  %v305 = vmax.f32 %v304, 0.0
  %306 = vst.msk [vmem:[%s4 + $0x8] sm:$0xff] %vm231, %v305
  %v307 = vmul.f32 %v149, %v126
  %308 = vmatprep.subr.mxu0 0.0
  %309 = vmatpush1.msra.mxu0 0.0
  %310 = vmatprep.subr.mxu0 0.0
  %311 = vmatpush1.msra.mxu0 0.0
  %312 = vmatprep.subr.mxu0 0.0
  %313 = vmatpush1.msra.mxu0 0.0
  %314 = vmatprep.subr.mxu0 0.0
  %315 = vmatpush1.msra.mxu0 0.0
  %316 = vmatprep.subr.mxu0 0.0
  %317 = vmatpush1.msra.mxu0 0.0
  %318 = vmatprep.subr.mxu0 0.0
  %319 = vmatpush1.msra.mxu0 0.0
  %320 = vmatprep.subr.mxu0 0.0
  %321 = vmatpush1.msra.mxu0 0.0
  %322 = vmatprep.subr.mxu0 0.0
  %323 = vmatpush1.msra.mxu0 0.0
  %324 = vmatprep.subr.mxu0 0.0
  %325 = vmatpush1.msra.mxu0 0.0
  %326 = vmatprep.subr.mxu0 0.0
  %327 = vmatpush1.msra.mxu0 0.0
  %328 = vmatprep.subr.mxu0 0.0
  %329 = vmatpush1.msra.mxu0 0.0
  %330 = vmatprep.subr.mxu0 0.0
  %331 = vmatpush1.msra.mxu0 0.0
  %332 = vmatprep.subr.mxu0 0.0
  %333 = vmatpush1.msra.mxu0 0.0
  %334 = vmatprep.subr.mxu0 0.0
  %335 = vmatpush1.msra.mxu0 0.0
  %336 = vmatprep.subr.mxu0 0.0
  %337 = vmatpush1.msra.mxu0 0.0
  %338 = vmatprep.subr.mxu0 0.0
  %339 = vmatpush1.msra.mxu0 %v126
  %340 = vmatprep.subr.mxu0 0.0
  %341 = vmatpush2.msra.mxu0 0.0
  %342 = vmatprep.subr.mxu0 0.0
  %343 = vmatpush2.msra.mxu0 0.0
  %344 = vmatprep.subr.mxu0 0.0
  %345 = vmatpush2.msra.mxu0 0.0
  %346 = vmatprep.subr.mxu0 0.0
  %347 = vmatpush2.msra.mxu0 0.0
  %348 = vmatprep.subr.mxu0 0.0
  %349 = vmatpush2.msra.mxu0 0.0
  %350 = vmatprep.subr.mxu0 0.0
  %351 = vmatpush2.msra.mxu0 0.0
  %352 = vmatprep.subr.mxu0 0.0
  %353 = vmatpush2.msra.mxu0 0.0
  %354 = vmatprep.subr.mxu0 0.0
  %355 = vmatpush2.msra.mxu0 0.0
  %356 = vmatprep.subr.mxu0 0.0
  %357 = vmatpush2.msra.mxu0 0.0
  %358 = vmatprep.subr.mxu0 0.0
  %359 = vmatpush2.msra.mxu0 0.0
  %360 = vmatprep.subr.mxu0 0.0
  %361 = vmatpush2.msra.mxu0 0.0
  %362 = vmatprep.subr.mxu0 0.0
  %363 = vmatpush2.msra.mxu0 0.0
  %364 = vmatprep.subr.mxu0 0.0
  %365 = vmatpush2.msra.mxu0 0.0
  %366 = vmatprep.subr.mxu0 0.0
  %367 = vmatpush2.msra.mxu0 0.0
  %368 = vmatprep.subr.mxu0 0.0
  %369 = vmatpush2.msra.mxu0 0.0
  %370 = vmatprep.subr.mxu0 0.0
  %371 = vmatpush2.msra.mxu0 0.0
  %372 = vmatprep.mubr.f32.mxu0 0.0
  %373 = vmatmul.mubr.f32.gmra.mxu0 %v157
  %v374 = vpop.f32.mrf.mxu0
  %v375 = vadd.f32 %v307, %v374
  %v376 = vpop.f32.mrf.mxu0
  %377 = vdwg.mxu0
  %v378 = vmul.f32 %v375, %v154
  %v379 = vmax.f32 %v378, 0.0
  %380 = vst.msk [vmem:[%s4 + $0x10] sm:$0xff] %vm231, %v379
  %s381 = scalar_lea.vmem %s3, 8
  %v382 = vld [vmem:[%s381] sm:$0xff]
  %v383 = vsel %vm145, %v382, 0.0
  %384 = vadd.xlane.f32.xlu0 %v383
  %v385 = vpop.xlane.xlu0 %384
  %v386 = vadd.f32 %v385, %v149
  %v387 = vrcp.pop %v386
  %v388 = vmul.f32 %v386, %v387
  %v389 = vsub.f32 2.0, %v388
  %v390 = vmul.f32 %v387, %v389
  %v391 = vmul.f32 %v149, %v131
  %v393 = vsel %vm145, %v382, 0
  %395 = vmatprep.subr.mxu0 0.0
  %396 = vmatpush1.msra.mxu0 0.0
  %397 = vmatprep.subr.mxu0 0.0
  %398 = vmatpush1.msra.mxu0 0.0
  %399 = vmatprep.subr.mxu0 0.0
  %400 = vmatpush1.msra.mxu0 0.0
  %401 = vmatprep.subr.mxu0 0.0
  %402 = vmatpush1.msra.mxu0 0.0
  %403 = vmatprep.subr.mxu0 0.0
  %404 = vmatpush1.msra.mxu0 0.0
  %405 = vmatprep.subr.mxu0 0.0
  %406 = vmatpush1.msra.mxu0 0.0
  %407 = vmatprep.subr.mxu0 0.0
  %408 = vmatpush1.msra.mxu0 0.0
  %409 = vmatprep.subr.mxu0 0.0
  %410 = vmatpush1.msra.mxu0 0.0
  %411 = vmatprep.subr.mxu0 0.0
  %412 = vmatpush1.msra.mxu0 0.0
  %413 = vmatprep.subr.mxu0 0.0
  %414 = vmatpush1.msra.mxu0 0.0
  %415 = vmatprep.subr.mxu0 0.0
  %416 = vmatpush1.msra.mxu0 0.0
  %417 = vmatprep.subr.mxu0 0.0
  %418 = vmatpush1.msra.mxu0 0.0
  %419 = vmatprep.subr.mxu0 0.0
  %420 = vmatpush1.msra.mxu0 0.0
  %421 = vmatprep.subr.mxu0 0.0
  %422 = vmatpush1.msra.mxu0 0.0
  %423 = vmatprep.subr.mxu0 0.0
  %424 = vmatpush1.msra.mxu0 0.0
  %425 = vmatprep.subr.mxu0 0.0
  %426 = vmatpush1.msra.mxu0 %v131
  %427 = vmatprep.subr.mxu0 0.0
  %428 = vmatpush2.msra.mxu0 0.0
  %429 = vmatprep.subr.mxu0 0.0
  %430 = vmatpush2.msra.mxu0 0.0
  %431 = vmatprep.subr.mxu0 0.0
  %432 = vmatpush2.msra.mxu0 0.0
  %433 = vmatprep.subr.mxu0 0.0
  %434 = vmatpush2.msra.mxu0 0.0
  %435 = vmatprep.subr.mxu0 0.0
  %436 = vmatpush2.msra.mxu0 0.0
  %437 = vmatprep.subr.mxu0 0.0
  %438 = vmatpush2.msra.mxu0 0.0
  %439 = vmatprep.subr.mxu0 0.0
  %440 = vmatpush2.msra.mxu0 0.0
  %441 = vmatprep.subr.mxu0 0.0
  %442 = vmatpush2.msra.mxu0 0.0
  %443 = vmatprep.subr.mxu0 0.0
  %444 = vmatpush2.msra.mxu0 0.0
  %445 = vmatprep.subr.mxu0 0.0
  %446 = vmatpush2.msra.mxu0 0.0
  %447 = vmatprep.subr.mxu0 0.0
  %448 = vmatpush2.msra.mxu0 0.0
  %449 = vmatprep.subr.mxu0 0.0
  %450 = vmatpush2.msra.mxu0 0.0
  %451 = vmatprep.subr.mxu0 0.0
  %452 = vmatpush2.msra.mxu0 0.0
  %453 = vmatprep.subr.mxu0 0.0
  %454 = vmatpush2.msra.mxu0 0.0
  %455 = vmatprep.subr.mxu0 0.0
  %456 = vmatpush2.msra.mxu0 0.0
  %457 = vmatprep.subr.mxu0 0.0
  %458 = vmatpush2.msra.mxu0 0.0
  %459 = vmatprep.mubr.f32.mxu0 0.0
  %460 = vmatmul.mubr.f32.gmra.mxu0 %v393
  %v461 = vpop.f32.mrf.mxu0
  %v462 = vadd.f32 %v391, %v461
  %v463 = vpop.f32.mrf.mxu0
  %464 = vdwg.mxu0
  %v465 = vmul.f32 %v462, %v390
  %v466 = vmax.f32 %v465, 0.0
  %467 = vst.msk [vmem:[%s4 + $0x18] sm:$0xff] %vm231, %v466
  %v468 = vmul.f32 %v149, %v136
  %469 = vmatprep.subr.mxu0 0.0
  %470 = vmatpush1.msra.mxu0 0.0
  %471 = vmatprep.subr.mxu0 0.0
  %472 = vmatpush1.msra.mxu0 0.0
  %473 = vmatprep.subr.mxu0 0.0
  %474 = vmatpush1.msra.mxu0 0.0
  %475 = vmatprep.subr.mxu0 0.0
  %476 = vmatpush1.msra.mxu0 0.0
  %477 = vmatprep.subr.mxu0 0.0
  %478 = vmatpush1.msra.mxu0 0.0
  %479 = vmatprep.subr.mxu0 0.0
  %480 = vmatpush1.msra.mxu0 0.0
  %481 = vmatprep.subr.mxu0 0.0
  %482 = vmatpush1.msra.mxu0 0.0
  %483 = vmatprep.subr.mxu0 0.0
  %484 = vmatpush1.msra.mxu0 0.0
  %485 = vmatprep.subr.mxu0 0.0
  %486 = vmatpush1.msra.mxu0 0.0
  %487 = vmatprep.subr.mxu0 0.0
  %488 = vmatpush1.msra.mxu0 0.0
  %489 = vmatprep.subr.mxu0 0.0
  %490 = vmatpush1.msra.mxu0 0.0
  %491 = vmatprep.subr.mxu0 0.0
  %492 = vmatpush1.msra.mxu0 0.0
  %493 = vmatprep.subr.mxu0 0.0
  %494 = vmatpush1.msra.mxu0 0.0
  %495 = vmatprep.subr.mxu0 0.0
  %496 = vmatpush1.msra.mxu0 0.0
  %497 = vmatprep.subr.mxu0 0.0
  %498 = vmatpush1.msra.mxu0 0.0
  %499 = vmatprep.subr.mxu0 0.0
  %500 = vmatpush1.msra.mxu0 %v136
  %501 = vmatprep.subr.mxu0 0.0
  %502 = vmatpush2.msra.mxu0 0.0
  %503 = vmatprep.subr.mxu0 0.0
  %504 = vmatpush2.msra.mxu0 0.0
  %505 = vmatprep.subr.mxu0 0.0
  %506 = vmatpush2.msra.mxu0 0.0
  %507 = vmatprep.subr.mxu0 0.0
  %508 = vmatpush2.msra.mxu0 0.0
  %509 = vmatprep.subr.mxu0 0.0
  %510 = vmatpush2.msra.mxu0 0.0
  %511 = vmatprep.subr.mxu0 0.0
  %512 = vmatpush2.msra.mxu0 0.0
  %513 = vmatprep.subr.mxu0 0.0
  %514 = vmatpush2.msra.mxu0 0.0
  %515 = vmatprep.subr.mxu0 0.0
  %516 = vmatpush2.msra.mxu0 0.0
  %517 = vmatprep.subr.mxu0 0.0
  %518 = vmatpush2.msra.mxu0 0.0
  %519 = vmatprep.subr.mxu0 0.0
  %520 = vmatpush2.msra.mxu0 0.0
  %521 = vmatprep.subr.mxu0 0.0
  %522 = vmatpush2.msra.mxu0 0.0
  %523 = vmatprep.subr.mxu0 0.0
  %524 = vmatpush2.msra.mxu0 0.0
  %525 = vmatprep.subr.mxu0 0.0
  %526 = vmatpush2.msra.mxu0 0.0
  %527 = vmatprep.subr.mxu0 0.0
  %528 = vmatpush2.msra.mxu0 0.0
  %529 = vmatprep.subr.mxu0 0.0
  %530 = vmatpush2.msra.mxu0 0.0
  %531 = vmatprep.subr.mxu0 0.0
  %532 = vmatpush2.msra.mxu0 0.0
  %533 = vmatprep.mubr.f32.mxu0 0.0
  %534 = vmatmul.mubr.f32.gmra.mxu0 %v393
  %v535 = vpop.f32.mrf.mxu0
  %v536 = vadd.f32 %v468, %v535
  %v537 = vpop.f32.mrf.mxu0
  %538 = vdwg.mxu0
  %v539 = vmul.f32 %v536, %v390
  %v540 = vmax.f32 %v539, 0.0
  %541 = vst.msk [vmem:[%s4 + $0x20] sm:$0xff] %vm231, %v540
  %v542 = vmul.f32 %v149, %v141
  %543 = vmatprep.subr.mxu0 0.0
  %544 = vmatpush1.msra.mxu0 0.0
  %545 = vmatprep.subr.mxu0 0.0
  %546 = vmatpush1.msra.mxu0 0.0
  %547 = vmatprep.subr.mxu0 0.0
  %548 = vmatpush1.msra.mxu0 0.0
  %549 = vmatprep.subr.mxu0 0.0
  %550 = vmatpush1.msra.mxu0 0.0
  %551 = vmatprep.subr.mxu0 0.0
  %552 = vmatpush1.msra.mxu0 0.0
  %553 = vmatprep.subr.mxu0 0.0
  %554 = vmatpush1.msra.mxu0 0.0
  %555 = vmatprep.subr.mxu0 0.0
  %556 = vmatpush1.msra.mxu0 0.0
  %557 = vmatprep.subr.mxu0 0.0
  %558 = vmatpush1.msra.mxu0 0.0
  %559 = vmatprep.subr.mxu0 0.0
  %560 = vmatpush1.msra.mxu0 0.0
  %561 = vmatprep.subr.mxu0 0.0
  %562 = vmatpush1.msra.mxu0 0.0
  %563 = vmatprep.subr.mxu0 0.0
  %564 = vmatpush1.msra.mxu0 0.0
  %565 = vmatprep.subr.mxu0 0.0
  %566 = vmatpush1.msra.mxu0 0.0
  %567 = vmatprep.subr.mxu0 0.0
  %568 = vmatpush1.msra.mxu0 0.0
  %569 = vmatprep.subr.mxu0 0.0
  %570 = vmatpush1.msra.mxu0 0.0
  %571 = vmatprep.subr.mxu0 0.0
  %572 = vmatpush1.msra.mxu0 0.0
  %573 = vmatprep.subr.mxu0 0.0
  %574 = vmatpush1.msra.mxu0 %v141
  %575 = vmatprep.subr.mxu0 0.0
  %576 = vmatpush2.msra.mxu0 0.0
  %577 = vmatprep.subr.mxu0 0.0
  %578 = vmatpush2.msra.mxu0 0.0
  %579 = vmatprep.subr.mxu0 0.0
  %580 = vmatpush2.msra.mxu0 0.0
  %581 = vmatprep.subr.mxu0 0.0
  %582 = vmatpush2.msra.mxu0 0.0
  %583 = vmatprep.subr.mxu0 0.0
  %584 = vmatpush2.msra.mxu0 0.0
  %585 = vmatprep.subr.mxu0 0.0
  %586 = vmatpush2.msra.mxu0 0.0
  %587 = vmatprep.subr.mxu0 0.0
  %588 = vmatpush2.msra.mxu0 0.0
  %589 = vmatprep.subr.mxu0 0.0
  %590 = vmatpush2.msra.mxu0 0.0
  %591 = vmatprep.subr.mxu0 0.0
  %592 = vmatpush2.msra.mxu0 0.0
  %593 = vmatprep.subr.mxu0 0.0
  %594 = vmatpush2.msra.mxu0 0.0
  %595 = vmatprep.subr.mxu0 0.0
  %596 = vmatpush2.msra.mxu0 0.0
  %597 = vmatprep.subr.mxu0 0.0
  %598 = vmatpush2.msra.mxu0 0.0
  %599 = vmatprep.subr.mxu0 0.0
  %600 = vmatpush2.msra.mxu0 0.0
  %601 = vmatprep.subr.mxu0 0.0
  %602 = vmatpush2.msra.mxu0 0.0
  %603 = vmatprep.subr.mxu0 0.0
  %604 = vmatpush2.msra.mxu0 0.0
  %605 = vmatprep.subr.mxu0 0.0
  %606 = vmatpush2.msra.mxu0 0.0
  %607 = vmatprep.mubr.f32.mxu0 0.0
  %608 = vmatmul.mubr.f32.gmra.mxu0 %v393
  %v609 = vpop.f32.mrf.mxu0
  %v610 = vadd.f32 %v542, %v609
  %v611 = vpop.f32.mrf.mxu0
  %612 = vdwg.mxu0
  %v613 = vmul.f32 %v610, %v390
  %v614 = vmax.f32 %v613, 0.0
  %615 = vst.msk [vmem:[%s4 + $0x28] sm:$0xff] %vm231, %v614
  // Predicated region
  $region18: #{tpu_custom_call.1} parent=0 // pred_check
    _
  $region19: #{tpu_custom_call.1} parent=0 // pred_check_branch
    %617 = sbr.rel (0) target = $region21
  $region20: #{tpu_custom_call.1} parent=0 // pred_region
    _
  $region21: #{tpu_custom_call.1} parent=0 // pred_fallthru
    _
  // Predicated region
  $region22: #{tpu_custom_call.1} parent=0 // pred_check
    _
  $region23: #{tpu_custom_call.1} parent=0 // pred_check_branch
    %619 = sbr.rel (0) target = $region25
  $region24: #{tpu_custom_call.1} parent=0 // pred_region
    _
  $region25: #{tpu_custom_call.1} parent=0 // pred_fallthru
    _

</llo_original>
